<compile_context>
chip_gen: v7x
topology: tpu7x:2x2x1
jax: 0.10.0
libtpu: 0.0.40
codegen_flags: <defaults>
</compile_context>

<pallas_src>
import functools

import jax
import jax.numpy as jnp
from jax.experimental import pallas as pl
from jax.experimental.pallas import tpu as pltpu

_LANE = 128
_TR_MAX = 2048  # rows of 128 lanes per block -> 1 MiB f32 per input block


def _dice_focal_kernel(p_ref, t_ref, out_ref,
                       focal_acc, inter_acc, p_acc, t_acc,
                       *, n_true, num_ch, smooth):
    c = pl.program_id(0)
    b = pl.program_id(1)
    k = pl.program_id(2)
    nc = pl.num_programs(0)
    nb = pl.num_programs(1)
    nk = pl.num_programs(2)

    first_of_channel = jnp.logical_and(b == 0, k == 0)
    last_of_channel = jnp.logical_and(b == nb - 1, k == nk - 1)

    # Zero the per-channel accumulators at the first tile of every channel.
    @pl.when(first_of_channel)
    def _():
        focal_acc[...] = jnp.zeros_like(focal_acc)
        inter_acc[...] = jnp.zeros_like(inter_acc)
        p_acc[...] = jnp.zeros_like(p_acc)
        t_acc[...] = jnp.zeros_like(t_acc)

    # Zero the running total (resident output block) at the very first step.
    @pl.when(jnp.logical_and(c == 0, first_of_channel))
    def _():
        out_ref[...] = jnp.zeros_like(out_ref)

    # ---- hot loop: elementwise BCE + focal modulation + partial sums ----
    p = p_ref[...].astype(jnp.float32)   # (TR, 128)
    t = t_ref[...].astype(jnp.float32)

    # binary_cross_entropy (reduction='none'); PyTorch clamps log at -100.
    logp = jnp.maximum(jnp.log(p), -100.0)
    log1mp = jnp.maximum(jnp.log(1.0 - p), -100.0)
    bce = -(t * logp + (1.0 - t) * log1mp)

    # focal: alpha=1, gamma=2 (exp kept for exactness with soft targets)
    pt = jnp.exp(-bce)
    one_m_pt = 1.0 - pt
    f_loss = one_m_pt * one_m_pt * bce

    # lane-wise partial sums (cross-lane reduce deferred to the finalize step)
    focal_acc[...] += jnp.sum(f_loss, axis=0, keepdims=True)
    inter_acc[...] += jnp.sum(p * t, axis=0, keepdims=True)
    p_acc[...] += jnp.sum(p, axis=0, keepdims=True)
    t_acc[...] += jnp.sum(t, axis=0, keepdims=True)

    # ---- per-channel finalize: focal mean + dice, add to running total ----
    @pl.when(last_of_channel)
    def _():
        focal_sum = jnp.sum(focal_acc[...])
        inter = jnp.sum(inter_acc[...])
        psum = jnp.sum(p_acc[...])
        tsum = jnp.sum(t_acc[...])
        focal_mean = focal_sum / n_true
        dsc = (2.0 * inter + smooth) / (psum + tsum + smooth)
        out_ref[...] = out_ref[...] + (focal_mean + (1.0 - dsc))

    # ---- global finalize: average over channels ----
    @pl.when(jnp.logical_and(c == nc - 1, last_of_channel))
    def _():
        out_ref[...] = out_ref[...] / num_ch


def dice_focal_loss(output, y_true):
    """output, y_true: (B, C, H, W) (any float dtype). Returns scalar f32 loss."""
    B, C, H, W = output.shape
    nhw = H * W

    # Pick a lane-dense tiling of the flattened spatial dim.
    r_raw = -(-nhw // _LANE)                 # ceil(nhw / 128)
    if r_raw <= _TR_MAX:
        tr = r_raw                           # one block per (b, c) slab
        r = r_raw
    else:
        tr = _TR_MAX                         # multiple of 8 -> valid tile rows
        r = -(-r_raw // tr) * tr             # pad rows up to a multiple of tr
    pad = r * _LANE - nhw

    def prep(x):
        x = x.reshape(B, C, nhw)             # free trailing reshape (no transpose)
        if pad:
            x = jnp.pad(x, ((0, 0), (0, 0), (0, pad)))  # zeros are loss-neutral
        return x.reshape(B, C, r, _LANE)

    p4 = prep(output)
    t4 = prep(y_true)

    kernel = functools.partial(
        _dice_focal_kernel,
        n_true=float(B * H * W),             # true (unpadded) per-channel count
        num_ch=float(C),
        smooth=1e-09,
    )

    grid = (C, B, r // tr)
    in_spec = pl.BlockSpec((None, None, tr, _LANE), lambda c, b, k: (b, c, k, 0))

    out = pl.pallas_call(
        kernel,
        out_shape=jax.ShapeDtypeStruct((1, 1), jnp.float32),
        grid=grid,
        in_specs=[in_spec, in_spec],
        out_specs=pl.BlockSpec((1, 1), lambda c, b, k: (0, 0)),
        scratch_shapes=[
            pltpu.VMEM((1, _LANE), jnp.float32),   # focal partial sums
            pltpu.VMEM((1, _LANE), jnp.float32),   # sum(p*t)
            pltpu.VMEM((1, _LANE), jnp.float32),   # sum(p)
            pltpu.VMEM((1, _LANE), jnp.float32),   # sum(t)
        ],
        compiler_params=pltpu.CompilerParams(
            dimension_semantics=("arbitrary", "arbitrary", "arbitrary")),
    )(p4, t4)
    return out[0, 0]


def _reference(output, y_true):
    # pure-JAX reference mirroring the PyTorch forward
    B, C, H, W = output.shape
    smooth = 1e-09
    loss = 0.0
    dice_loss = 0.0
    for c in range(C):
        p = output[:, c].astype(jnp.float32)
        t = y_true[:, c].astype(jnp.float32)
        logp = jnp.maximum(jnp.log(p), -100.0)
        log1mp = jnp.maximum(jnp.log(1.0 - p), -100.0)
        bce = -(t * logp + (1.0 - t) * log1mp)
        pt = jnp.exp(-bce)
        loss += jnp.mean((1.0 - pt) ** 2 * bce)
        pf = p.reshape(-1)
        tf = t.reshape(-1)
        inter = jnp.sum(pf * tf)
        dsc = (2.0 * inter + smooth) / (jnp.sum(pf) + jnp.sum(tf) + smooth)
        dice_loss += 1.0 - dsc
    return (loss + dice_loss) / C


if __name__ == "__main__":
    key = jax.random.PRNGKey(0)
    k1, k2 = jax.random.split(key)
    B, C, H, W = 2, 4, 16, 16
    # predictions are probabilities in (0, 1) (module uses BCE without logits)
    output = jax.nn.sigmoid(jax.random.normal(k1, (B, C, H, W), jnp.float32))
    y_true = (jax.random.uniform(k2, (B, C, H, W)) > 0.5).astype(jnp.float32)

    loss = dice_focal_loss(output, y_true)
    jax.block_until_ready(loss)

    ref = _reference(output, y_true)
    assert jnp.allclose(loss, ref, rtol=1e-5, atol=1e-5), (loss, ref)
    print("KERNEL_OK")
</pallas_src>

<mosaic_0001>
module attributes {stable_mosaic.version = 11 : i64} {
  func.func @_dice_focal_kernel(%arg0: i32, %arg1: i32, %arg2: i32, %arg3: memref<1x1x2x128xf32, #tpu.memory_space<vmem>>, %arg4: memref<1x1x2x128xf32, #tpu.memory_space<vmem>>, %arg5: memref<1x1xf32, #tpu.memory_space<vmem>>, %arg6: memref<1x128xf32, #tpu.memory_space<vmem>>, %arg7: memref<1x128xf32, #tpu.memory_space<vmem>>, %arg8: memref<1x128xf32, #tpu.memory_space<vmem>>, %arg9: memref<1x128xf32, #tpu.memory_space<vmem>>) attributes {dimension_semantics = [#tpu.dimension_semantics<arbitrary>, #tpu.dimension_semantics<arbitrary>, #tpu.dimension_semantics<arbitrary>], iteration_bounds = array<i64: 4, 2, 1>, scalar_prefetch = 0 : i64, scratch_operands = 4 : i64, tpu.core_type = #tpu.core_type<tc>, window_params = [{transform_indices = @transform_0, window_bounds = array<i64: 1, 1, 2, 128>}, {transform_indices = @transform_1, window_bounds = array<i64: 1, 1, 2, 128>}, {pipeline_mode = #tpu.pipeline_mode<synchronous>, transform_indices = @transform_2, window_bounds = array<i64: 1, 1>}]} {
    %c0_i32 = arith.constant 0 : i32
    %0 = arith.cmpi eq, %arg1, %c0_i32 : i32
    %c0_i32_0 = arith.constant 0 : i32
    %1 = arith.cmpi eq, %arg2, %c0_i32_0 : i32
    %2 = arith.andi %0, %1 : i1
    %c1_i32 = arith.constant 1 : i32
    %3 = arith.cmpi eq, %arg1, %c1_i32 : i32
    %c0_i32_1 = arith.constant 0 : i32
    %4 = arith.cmpi eq, %arg2, %c0_i32_1 : i32
    %5 = arith.andi %3, %4 : i1
    %6 = arith.extui %2 : i1 to i32
    %c0_i32_2 = arith.constant 0 : i32
    %7 = arith.cmpi ne, %6, %c0_i32_2 : i32
    scf.if %7 {
      %cst_40 = arith.constant 0.000000e+00 : f32
      %65 = vector.broadcast %cst_40 : f32 to vector<1x128xf32>
      %c0_41 = arith.constant 0 : index
      %c0_42 = arith.constant 0 : index
      %66 = vector.load %arg6[%c0_41, %c0_42] : memref<1x128xf32, #tpu.memory_space<vmem>>, vector<1x128xf32>
      tpu.vector_store %arg6[%c0_41, %c0_42], %65 {strides = array<i32>} : memref<1x128xf32, #tpu.memory_space<vmem>>, vector<1x128xf32>,
      %cst_43 = arith.constant 0.000000e+00 : f32
      %67 = vector.broadcast %cst_43 : f32 to vector<1x128xf32>
      %c0_44 = arith.constant 0 : index
      %c0_45 = arith.constant 0 : index
      %68 = vector.load %arg7[%c0_44, %c0_45] : memref<1x128xf32, #tpu.memory_space<vmem>>, vector<1x128xf32>
      tpu.vector_store %arg7[%c0_44, %c0_45], %67 {strides = array<i32>} : memref<1x128xf32, #tpu.memory_space<vmem>>, vector<1x128xf32>,
      %cst_46 = arith.constant 0.000000e+00 : f32
      %69 = vector.broadcast %cst_46 : f32 to vector<1x128xf32>
      %c0_47 = arith.constant 0 : index
      %c0_48 = arith.constant 0 : index
      %70 = vector.load %arg8[%c0_47, %c0_48] : memref<1x128xf32, #tpu.memory_space<vmem>>, vector<1x128xf32>
      tpu.vector_store %arg8[%c0_47, %c0_48], %69 {strides = array<i32>} : memref<1x128xf32, #tpu.memory_space<vmem>>, vector<1x128xf32>,
      %cst_49 = arith.constant 0.000000e+00 : f32
      %71 = vector.broadcast %cst_49 : f32 to vector<1x128xf32>
      %c0_50 = arith.constant 0 : index
      %c0_51 = arith.constant 0 : index
      %72 = vector.load %arg9[%c0_50, %c0_51] : memref<1x128xf32, #tpu.memory_space<vmem>>, vector<1x128xf32>
      tpu.vector_store %arg9[%c0_50, %c0_51], %71 {strides = array<i32>} : memref<1x128xf32, #tpu.memory_space<vmem>>, vector<1x128xf32>,
    } else {
    }
    %c0_i32_3 = arith.constant 0 : i32
    %8 = arith.cmpi eq, %arg0, %c0_i32_3 : i32
    %9 = arith.andi %8, %2 : i1
    %10 = arith.extui %9 : i1 to i32
    %c0_i32_4 = arith.constant 0 : i32
    %11 = arith.cmpi ne, %10, %c0_i32_4 : i32
    scf.if %11 {
      %cst_40 = arith.constant 0.000000e+00 : f32
      %65 = vector.broadcast %cst_40 : f32 to vector<1x1xf32>
      %c0_41 = arith.constant 0 : index
      %c0_42 = arith.constant 0 : index
      %66 = vector.load %arg5[%c0_41, %c0_42] : memref<1x1xf32, #tpu.memory_space<vmem>>, vector<1x1xf32>
      tpu.vector_store %arg5[%c0_41, %c0_42], %65 {strides = array<i32>} : memref<1x1xf32, #tpu.memory_space<vmem>>, vector<1x1xf32>,
    } else {
    }
    %c0 = arith.constant 0 : index
    %c0_5 = arith.constant 0 : index
    %c0_6 = arith.constant 0 : index
    %c0_7 = arith.constant 0 : index
    %12 = vector.load %arg3[%c0, %c0_5, %c0_6, %c0_7] : memref<1x1x2x128xf32, #tpu.memory_space<vmem>>, vector<1x1x2x128xf32>
    %13 = vector.shape_cast %12 : vector<1x1x2x128xf32> to vector<2x128xf32>
    %c0_8 = arith.constant 0 : index
    %c0_9 = arith.constant 0 : index
    %c0_10 = arith.constant 0 : index
    %c0_11 = arith.constant 0 : index
    %14 = vector.load %arg4[%c0_8, %c0_9, %c0_10, %c0_11] : memref<1x1x2x128xf32, #tpu.memory_space<vmem>>, vector<1x1x2x128xf32>
    %15 = vector.shape_cast %14 : vector<1x1x2x128xf32> to vector<2x128xf32>
    %16 = math.log %13 : vector<2x128xf32>
    %cst = arith.constant -1.000000e+02 : f32
    %17 = vector.broadcast %cst : f32 to vector<2x128xf32>
    %18 = arith.maximumf %16, %17 : vector<2x128xf32>
    %cst_12 = arith.constant 1.000000e+00 : f32
    %19 = vector.broadcast %cst_12 : f32 to vector<2x128xf32>
    %20 = arith.subf %19, %13 : vector<2x128xf32>
    %21 = math.log %20 : vector<2x128xf32>
    %cst_13 = arith.constant -1.000000e+02 : f32
    %22 = vector.broadcast %cst_13 : f32 to vector<2x128xf32>
    %23 = arith.maximumf %21, %22 : vector<2x128xf32>
    %24 = arith.mulf %15, %18 : vector<2x128xf32>
    %cst_14 = arith.constant 1.000000e+00 : f32
    %25 = vector.broadcast %cst_14 : f32 to vector<2x128xf32>
    %26 = arith.subf %25, %15 : vector<2x128xf32>
    %27 = arith.mulf %26, %23 : vector<2x128xf32>
    %28 = arith.addf %24, %27 : vector<2x128xf32>
    %cst_15 = arith.constant 0.000000e+00 : f32
    %29 = vector.broadcast %cst_15 : f32 to vector<2x128xf32>
    %30 = arith.subf %29, %28 : vector<2x128xf32>
    %cst_16 = arith.constant 0.000000e+00 : f32
    %31 = vector.broadcast %cst_16 : f32 to vector<2x128xf32>
    %32 = arith.subf %31, %30 : vector<2x128xf32>
    %33 = math.exp %32 : vector<2x128xf32>
    %cst_17 = arith.constant 1.000000e+00 : f32
    %34 = vector.broadcast %cst_17 : f32 to vector<2x128xf32>
    %35 = arith.subf %34, %33 : vector<2x128xf32>
    %36 = arith.mulf %35, %35 : vector<2x128xf32>
    %37 = arith.mulf %36, %30 : vector<2x128xf32>
    %c0_18 = arith.constant 0 : index
    %c0_19 = arith.constant 0 : index
    %38 = vector.load %arg6[%c0_18, %c0_19] : memref<1x128xf32, #tpu.memory_space<vmem>>, vector<1x128xf32>
    %cst_20 = arith.constant dense<0.000000e+00> : vector<128xf32>
    %39 = vector.multi_reduction <add>, %37, %cst_20 [0] : vector<2x128xf32> to vector<128xf32>
    %40 = vector.shape_cast %39 : vector<128xf32> to vector<1x128xf32>
    %41 = arith.addf %38, %40 : vector<1x128xf32>
    %c0_21 = arith.constant 0 : index
    %c0_22 = arith.constant 0 : index
    %42 = vector.load %arg6[%c0_21, %c0_22] : memref<1x128xf32, #tpu.memory_space<vmem>>, vector<1x128xf32>
    tpu.vector_store %arg6[%c0_21, %c0_22], %41 {strides = array<i32>} : memref<1x128xf32, #tpu.memory_space<vmem>>, vector<1x128xf32>,
    %c0_23 = arith.constant 0 : index
    %c0_24 = arith.constant 0 : index
    %43 = vector.load %arg7[%c0_23, %c0_24] : memref<1x128xf32, #tpu.memory_space<vmem>>, vector<1x128xf32>
    %44 = arith.mulf %13, %15 : vector<2x128xf32>
    %cst_25 = arith.constant dense<0.000000e+00> : vector<128xf32>
    %45 = vector.multi_reduction <add>, %44, %cst_25 [0] : vector<2x128xf32> to vector<128xf32>
    %46 = vector.shape_cast %45 : vector<128xf32> to vector<1x128xf32>
    %47 = arith.addf %43, %46 : vector<1x128xf32>
    %c0_26 = arith.constant 0 : index
    %c0_27 = arith.constant 0 : index
    %48 = vector.load %arg7[%c0_26, %c0_27] : memref<1x128xf32, #tpu.memory_space<vmem>>, vector<1x128xf32>
    tpu.vector_store %arg7[%c0_26, %c0_27], %47 {strides = array<i32>} : memref<1x128xf32, #tpu.memory_space<vmem>>, vector<1x128xf32>,
    %c0_28 = arith.constant 0 : index
    %c0_29 = arith.constant 0 : index
    %49 = vector.load %arg8[%c0_28, %c0_29] : memref<1x128xf32, #tpu.memory_space<vmem>>, vector<1x128xf32>
    %cst_30 = arith.constant dense<0.000000e+00> : vector<128xf32>
    %50 = vector.multi_reduction <add>, %13, %cst_30 [0] : vector<2x128xf32> to vector<128xf32>
    %51 = vector.shape_cast %50 : vector<128xf32> to vector<1x128xf32>
    %52 = arith.addf %49, %51 : vector<1x128xf32>
    %c0_31 = arith.constant 0 : index
    %c0_32 = arith.constant 0 : index
    %53 = vector.load %arg8[%c0_31, %c0_32] : memref<1x128xf32, #tpu.memory_space<vmem>>, vector<1x128xf32>
    tpu.vector_store %arg8[%c0_31, %c0_32], %52 {strides = array<i32>} : memref<1x128xf32, #tpu.memory_space<vmem>>, vector<1x128xf32>,
    %c0_33 = arith.constant 0 : index
    %c0_34 = arith.constant 0 : index
    %54 = vector.load %arg9[%c0_33, %c0_34] : memref<1x128xf32, #tpu.memory_space<vmem>>, vector<1x128xf32>
    %cst_35 = arith.constant dense<0.000000e+00> : vector<128xf32>
    %55 = vector.multi_reduction <add>, %15, %cst_35 [0] : vector<2x128xf32> to vector<128xf32>
    %56 = vector.shape_cast %55 : vector<128xf32> to vector<1x128xf32>
    %57 = arith.addf %54, %56 : vector<1x128xf32>
    %c0_36 = arith.constant 0 : index
    %c0_37 = arith.constant 0 : index
    %58 = vector.load %arg9[%c0_36, %c0_37] : memref<1x128xf32, #tpu.memory_space<vmem>>, vector<1x128xf32>
    tpu.vector_store %arg9[%c0_36, %c0_37], %57 {strides = array<i32>} : memref<1x128xf32, #tpu.memory_space<vmem>>, vector<1x128xf32>,
    %59 = arith.extui %5 : i1 to i32
    %c0_i32_38 = arith.constant 0 : i32
    %60 = arith.cmpi ne, %59, %c0_i32_38 : i32
    scf.if %60 {
      %c0_40 = arith.constant 0 : index
      %c0_41 = arith.constant 0 : index
      %65 = vector.load %arg6[%c0_40, %c0_41] : memref<1x128xf32, #tpu.memory_space<vmem>>, vector<1x128xf32>
      %66 = vector.shape_cast %65 : vector<1x128xf32> to vector<1x1x128xf32>
      %cst_42 = arith.constant dense<0.000000e+00> : vector<1xf32>
      %67 = vector.multi_reduction <add>, %66, %cst_42 [1, 2] : vector<1x1x128xf32> to vector<1xf32>
      %68 = vector.shape_cast %67 : vector<1xf32> to vector<1x1x1xf32>
      %69 = vector.extract %68[0, 0, 0] : f32 from vector<1x1x1xf32>
      %c0_43 = arith.constant 0 : index
      %c0_44 = arith.constant 0 : index
      %70 = vector.load %arg7[%c0_43, %c0_44] : memref<1x128xf32, #tpu.memory_space<vmem>>, vector<1x128xf32>
      %71 = vector.shape_cast %70 : vector<1x128xf32> to vector<1x1x128xf32>
      %cst_45 = arith.constant dense<0.000000e+00> : vector<1xf32>
      %72 = vector.multi_reduction <add>, %71, %cst_45 [1, 2] : vector<1x1x128xf32> to vector<1xf32>
      %73 = vector.shape_cast %72 : vector<1xf32> to vector<1x1x1xf32>
      %74 = vector.extract %73[0, 0, 0] : f32 from vector<1x1x1xf32>
      %c0_46 = arith.constant 0 : index
      %c0_47 = arith.constant 0 : index
      %75 = vector.load %arg8[%c0_46, %c0_47] : memref<1x128xf32, #tpu.memory_space<vmem>>, vector<1x128xf32>
      %76 = vector.shape_cast %75 : vector<1x128xf32> to vector<1x1x128xf32>
      %cst_48 = arith.constant dense<0.000000e+00> : vector<1xf32>
      %77 = vector.multi_reduction <add>, %76, %cst_48 [1, 2] : vector<1x1x128xf32> to vector<1xf32>
      %78 = vector.shape_cast %77 : vector<1xf32> to vector<1x1x1xf32>
      %79 = vector.extract %78[0, 0, 0] : f32 from vector<1x1x1xf32>
      %c0_49 = arith.constant 0 : index
      %c0_50 = arith.constant 0 : index
      %80 = vector.load %arg9[%c0_49, %c0_50] : memref<1x128xf32, #tpu.memory_space<vmem>>, vector<1x128xf32>
      %81 = vector.shape_cast %80 : vector<1x128xf32> to vector<1x1x128xf32>
      %cst_51 = arith.constant dense<0.000000e+00> : vector<1xf32>
      %82 = vector.multi_reduction <add>, %81, %cst_51 [1, 2] : vector<1x1x128xf32> to vector<1xf32>
      %83 = vector.shape_cast %82 : vector<1xf32> to vector<1x1x1xf32>
      %84 = vector.extract %83[0, 0, 0] : f32 from vector<1x1x1xf32>
      %cst_52 = arith.constant 5.120000e+02 : f32
      %85 = arith.divf %69, %cst_52 : f32
      %cst_53 = arith.constant 2.000000e+00 : f32
      %86 = arith.mulf %cst_53, %74 : f32
      %cst_54 = arith.constant 9.99999971E-10 : f32
      %87 = arith.addf %86, %cst_54 : f32
      %88 = arith.addf %79, %84 : f32
      %cst_55 = arith.constant 9.99999971E-10 : f32
      %89 = arith.addf %88, %cst_55 : f32
      %90 = arith.divf %87, %89 : f32
      %c0_56 = arith.constant 0 : index
      %c0_57 = arith.constant 0 : index
      %91 = vector.load %arg5[%c0_56, %c0_57] : memref<1x1xf32, #tpu.memory_space<vmem>>, vector<1x1xf32>
      %cst_58 = arith.constant 1.000000e+00 : f32
      %92 = arith.subf %cst_58, %90 : f32
      %93 = arith.addf %85, %92 : f32
      %94 = vector.broadcast %93 : f32 to vector<1x1xf32>
      %95 = arith.addf %91, %94 : vector<1x1xf32>
      %c0_59 = arith.constant 0 : index
      %c0_60 = arith.constant 0 : index
      %96 = vector.load %arg5[%c0_59, %c0_60] : memref<1x1xf32, #tpu.memory_space<vmem>>, vector<1x1xf32>
      tpu.vector_store %arg5[%c0_59, %c0_60], %95 {strides = array<i32>} : memref<1x1xf32, #tpu.memory_space<vmem>>, vector<1x1xf32>,
    } else {
    }
    %c3_i32 = arith.constant 3 : i32
    %61 = arith.cmpi eq, %arg0, %c3_i32 : i32
    %62 = arith.andi %61, %5 : i1
    %63 = arith.extui %62 : i1 to i32
    %c0_i32_39 = arith.constant 0 : i32
    %64 = arith.cmpi ne, %63, %c0_i32_39 : i32
    scf.if %64 {
      %c0_40 = arith.constant 0 : index
      %c0_41 = arith.constant 0 : index
      %65 = vector.load %arg5[%c0_40, %c0_41] : memref<1x1xf32, #tpu.memory_space<vmem>>, vector<1x1xf32>
      %cst_42 = arith.constant 4.000000e+00 : f32
      %66 = vector.broadcast %cst_42 : f32 to vector<1x1xf32>
      %67 = arith.divf %65, %66 : vector<1x1xf32>
      %c0_43 = arith.constant 0 : index
      %c0_44 = arith.constant 0 : index
      %68 = vector.load %arg5[%c0_43, %c0_44] : memref<1x1xf32, #tpu.memory_space<vmem>>, vector<1x1xf32>
      tpu.vector_store %arg5[%c0_43, %c0_44], %67 {strides = array<i32>} : memref<1x1xf32, #tpu.memory_space<vmem>>, vector<1x1xf32>,
    } else {
    }
    return
  }
  func.func @transform_0(%arg0: i32, %arg1: i32, %arg2: i32) -> (i32, i32, i32, i32) {
    %c0_i32 = arith.constant 0 : i32
    %c0_i32_0 = arith.constant 0 : i32
    return %arg1, %arg0, %arg2, %c0_i32 : i32, i32, i32, i32
  }
  func.func @transform_1(%arg0: i32, %arg1: i32, %arg2: i32) -> (i32, i32, i32, i32) {
    %c0_i32 = arith.constant 0 : i32
    %c0_i32_0 = arith.constant 0 : i32
    return %arg1, %arg0, %arg2, %c0_i32 : i32, i32, i32, i32
  }
  func.func @transform_2(%arg0: i32, %arg1: i32, %arg2: i32) -> (i32, i32) {
    %c0_i32 = arith.constant 0 : i32
    %c0_i32_0 = arith.constant 0 : i32
    %c0_i32_1 = arith.constant 0 : i32
    return %c0_i32, %c0_i32_0 : i32, i32
  }
}

</mosaic_0001>

<llo_original>
// kernel: tpu_custom_call.1
$region0: #{tpu_custom_call.1}
  #allocation0 [shape = 'u32[]', space=smem, size = 0x4, offset = 0x4, fixed_abs, tag = 'smem constant byte address 0x4 - core index']
  #allocation1 [shape = 'u32[144,128]{1,0:T(1,128)}', space=vmem, size = 0x12000, scoped, tag = 'internal scratch']
  #allocation2 [shape = 'f32[1,128]{1,0:T(1,128)}', space=vmem, size = 0x200, scoped, tag = 'scratch operand']
  #allocation3 [shape = 'f32[1,128]{1,0:T(1,128)}', space=vmem, size = 0x200, scoped, tag = 'scratch operand']
  #allocation4 [shape = 'f32[1,128]{1,0:T(1,128)}', space=vmem, size = 0x200, scoped, tag = 'scratch operand']
  #allocation5 [shape = 'f32[1,128]{1,0:T(1,128)}', space=vmem, size = 0x200, scoped, tag = 'scratch operand']
  %s0 = inlined_call_operand.hbm [shape: f32[2,4,2,128], index: 0, kind: input, shape index: {}]
  %s1 = inlined_call_operand.hbm [shape: f32[2,4,2,128], index: 1, kind: input, shape index: {}]
  %s2 = inlined_call_operand.hbm [shape: f32[1,1], index: 2, kind: output, shape index: {}]
  %s3 = sld [smem:[#allocation0]]
  $region65: #{tpu_custom_call.1} parent=0
    _
  %s5 = ssub.s32 1, %s3
  %s6 = scalar_select 0, %s5, %s3
  $region1: #{tpu_custom_call.1} parent=0
    #allocation6 [shape = 'u8[2048]{0}', space=vmem, size = 0x800, scoped, tag = 'input window, operand 0']
    #allocation7 [shape = 's32[2]{0}', space=sflag, size = 0x8, scoped, tag = 'scoped memory for tpu_custom_call.1']
    #allocation8 [shape = 's32[2]{0}', space=sflag, size = 0x8, scoped, tag = 'scoped memory for tpu_custom_call.1']
    #allocation9 [shape = 'u8[2048]{0}', space=vmem, size = 0x800, scoped, tag = 'input window, operand 1']
    #allocation10 [shape = 's32[2]{0}', space=sflag, size = 0x8, scoped, tag = 'scoped memory for tpu_custom_call.1']
    #allocation11 [shape = 'u8[512]{0}', space=vmem, size = 0x400, scoped, tag = 'output window, operand 0, single buffered']
    %7 = vsyncpa [#allocation7], 0
    %s8 = scalar_lea.sflag [#allocation7], 1
    %9 = vsyncpa %s8, 0
    %10 = vsyncpa [#allocation10], 0
    %s11 = scalar_lea.sflag [#allocation10], 1
    %12 = vsyncpa %s11, 0
    %13 = vsyncpa [#allocation8], 0
    loop: start=0, step=1, limit=10
    $region2: #{tpu_custom_call.1} parent=1 // loop_pre_header
      _
    $region3: #{tpu_custom_call.1} parent=1 // loop_header
      %s15 = sphi 0, %s19
      %p16 = scmp.ge.s32.totalorder %s15, 10
      %s22 = sphi 0, %s41
      %s23 = sphi 0, %s37
      %s24 = sphi 0, %s33
      %s25 = sphi 0, %s22
      %s26 = sphi 0, %s23
      %s27 = sphi 0, %s24
      %s28 = sphi 0, %s25
      %s29 = sphi 0, %s26
      %s30 = sphi 0, %s27
      %s48 = sphi 0, %s50
      %s51 = sphi 0, %s48
      %s52 = sphi 0, %s51
      %s68 = sphi 0, %s52
      %s78 = sphi 0, %s80
      %s81 = sphi 0, %s78
      %s82 = sphi 0, %s81
      %s98 = sphi 0, %s82
      %s102 = sphi 0, %s102
      %s104 = sphi 0, %s102
      %s105 = sphi 0, %s104
      %s119 = sphi 0, %s105
    $region4: #{tpu_custom_call.1} parent=1 // loop_header_branch
      %18 = sbr.rel (%p16) target = $region8
    $region5: #{tpu_custom_call.1} parent=1 // loop_body
      %s20 = ssub.s32 %s15, 1
      %s21 = ssub.s32 %s15, 2
      %s31 = sadd.s32 1, %s24
      %p32 = scmp.ge.s32.totalorder %s31, 1
      %s33 = scalar_select %p32, 0, %s31
      %s34 = sadd.s32 1, %s23
      %s35 = scalar_select %p32, %s34, %s23
      %p36 = scmp.ge.s32.totalorder %s35, 2
      %s37 = scalar_select %p36, 0, %s35
      %s38 = sadd.s32 1, %s22
      %s39 = scalar_select %p36, %s38, %s22
      %p40 = scmp.ge.s32.totalorder %s39, 4
      %s41 = scalar_select %p40, 0, %s39
      %s42 = ssub.s32 %s23, %s37
      %s43 = ssub.s32 %s22, %s41
      %s44 = sor.u32 %s42, %s43
      %s45 = ssub.s32 %s24, %s33
      %s46 = sor.u32 %s44, %s45
      %p47 = scmp.eq.s32.totalorder %s46, 0
      %s49 = sadd.s32 %s48, 1
      %s50 = scalar_select %p47, %s48, %s49
      %p53 = pneg %p47
      %p54 = scmp.eq.s32.totalorder %s15, 7
      %p55 = por %p53, %p54
      %p56 = scmp.ne.s32.totalorder %s48, %s51
      %p57 = scmp.eq.s32.totalorder %s15, 0
      %p58 = por %p56, %p57
      %p59 = scmp.ne.s32.totalorder %s48, %s51
      %p60 = scmp.eq.s32.totalorder %s20, 7
      %p61 = por %p59, %p60
      %p62 = scmp.ne.s32.totalorder %s51, %s52
      %p63 = scmp.eq.s32.totalorder %s20, 0
      %p64 = por %p62, %p63
      %p65 = scmp.ne.s32.totalorder %s51, %s52
      %p66 = scmp.eq.s32.totalorder %s21, 7
      %p67 = por %p65, %p66
      %p69 = scmp.ne.s32.totalorder %s52, %s68
      %p70 = scmp.eq.s32.totalorder %s21, 0
      %p71 = por %p69, %p70
      %s72 = ssub.s32 %s23, %s37
      %s73 = ssub.s32 %s22, %s41
      %s74 = sor.u32 %s72, %s73
      %s75 = ssub.s32 %s24, %s33
      %s76 = sor.u32 %s74, %s75
      %p77 = scmp.eq.s32.totalorder %s76, 0
      %s79 = sadd.s32 %s78, 1
      %s80 = scalar_select %p77, %s78, %s79
      %p83 = pneg %p77
      %p84 = scmp.eq.s32.totalorder %s15, 7
      %p85 = por %p83, %p84
      %p86 = scmp.ne.s32.totalorder %s78, %s81
      %p87 = scmp.eq.s32.totalorder %s15, 0
      %p88 = por %p86, %p87
      %p89 = scmp.ne.s32.totalorder %s78, %s81
      %p90 = scmp.eq.s32.totalorder %s20, 7
      %p91 = por %p89, %p90
      %p92 = scmp.ne.s32.totalorder %s81, %s82
      %p93 = scmp.eq.s32.totalorder %s20, 0
      %p94 = por %p92, %p93
      %p95 = scmp.ne.s32.totalorder %s81, %s82
      %p96 = scmp.eq.s32.totalorder %s21, 7
      %p97 = por %p95, %p96
      %p99 = scmp.ne.s32.totalorder %s82, %s98
      %p100 = scmp.eq.s32.totalorder %s21, 0
      %p101 = por %p99, %p100
      %s103 = sadd.s32 %s102, 1
      %p106 = scmp.eq.s32.totalorder %s15, 7
      %p107 = scmp.ne.s32.totalorder %s102, %s104
      %p108 = scmp.eq.s32.totalorder %s15, 0
      %p109 = por %p107, %p108
      %p110 = scmp.ne.s32.totalorder %s102, %s104
      %p111 = scmp.eq.s32.totalorder %s20, 7
      %p112 = por %p110, %p111
      %p113 = scmp.ne.s32.totalorder %s104, %s105
      %p114 = scmp.eq.s32.totalorder %s20, 0
      %p115 = por %p113, %p114
      %p116 = scmp.ne.s32.totalorder %s104, %s105
      %p117 = scmp.eq.s32.totalorder %s21, 7
      %p118 = por %p116, %p117
      %p120 = scmp.ne.s32.totalorder %s105, %s119
      %p121 = scmp.eq.s32.totalorder %s21, 0
      %p122 = por %p120, %p121
      %p123 = scmp.le.s32.totalorder 1, %s15
      %p124 = scmp.lt.s32.totalorder %s15, 9
      %p125 = pnand %p123, %p124
      %p126 = pneg %p125
      // Predicated region
      $region9: #{tpu_custom_call.1} parent=5 // pred_check
        _
      $region10: #{tpu_custom_call.1} parent=5 // pred_check_branch
        %128 = sbr.rel (%p125) target = $region12
      $region11: #{tpu_custom_call.1} parent=5 // pred_region
        %s129 = ssub.s32 %s15, 1
      $region12: #{tpu_custom_call.1} parent=5 // pred_fallthru
        _
      %p130 = scmp.lt.s32.totalorder %s15, 8
      // Predicated region
      $region13: #{tpu_custom_call.1} parent=5 // pred_check
        %p131 = pneg %p130
      $region14: #{tpu_custom_call.1} parent=5 // pred_check_branch
        %133 = sbr.rel (%p131) target = $region16
      $region15: #{tpu_custom_call.1} parent=5 // pred_region
        // Predicated region
        $region17: #{tpu_custom_call.1} parent=15 // pred_check
          %p134 = pneg %p58
        $region18: #{tpu_custom_call.1} parent=15 // pred_check_branch
          %136 = sbr.rel (%p134) target = $region20
        $region19: #{tpu_custom_call.1} parent=15 // pred_region
          %s137 = sand.u32 %s48, 1
          %s138 = scalar_lea.sflag [#allocation7], %s137
          %s139 = sand.u32 %s48, 1
          %s140 = smul.addr %s139, 2
          %s141 = scalar_lea.vmem [#allocation6], %s140
          %s143 = ssub.s32 32, 32
          %144 = vsyncadd %s138, %s143
          %s145 = sadd.s32 %s24, %s22
          %s146 = smul.addr %s23, 4
          %s147 = sadd.s32 %s145, %s146
          %s148 = smul.addr %s147, 32
          %s149 = scalar_lea.hbm %s0, %s148
          %s151 = sshll.u32 %s141, 4
          %s152 = int_to_ptr.vmem [resolvable:$true] %s151
          %154 = dma.hbm_to_vmem [thread:$0]  %s149, 32, %s152, %s138
        $region20: #{tpu_custom_call.1} parent=15 // pred_fallthru
          _
        // Predicated region
        $region21: #{tpu_custom_call.1} parent=15 // pred_check
          %p155 = pneg %p88
        $region22: #{tpu_custom_call.1} parent=15 // pred_check_branch
          %157 = sbr.rel (%p155) target = $region24
        $region23: #{tpu_custom_call.1} parent=15 // pred_region
          %s158 = sand.u32 %s78, 1
          %s159 = scalar_lea.sflag [#allocation10], %s158
          %s160 = sand.u32 %s78, 1
          %s161 = smul.addr %s160, 2
          %s162 = scalar_lea.vmem [#allocation9], %s161
          %s164 = ssub.s32 32, 32
          %165 = vsyncadd %s159, %s164
          %s166 = sadd.s32 %s24, %s22
          %s167 = smul.addr %s23, 4
          %s168 = sadd.s32 %s166, %s167
          %s169 = smul.addr %s168, 32
          %s170 = scalar_lea.hbm %s1, %s169
          %s172 = sshll.u32 %s162, 4
          %s173 = int_to_ptr.vmem [resolvable:$true] %s172
          %175 = dma.hbm_to_vmem [thread:$0]  %s170, 32, %s173, %s159
        $region24: #{tpu_custom_call.1} parent=15 // pred_fallthru
          _
      $region16: #{tpu_custom_call.1} parent=5 // pred_fallthru
        _
      %p176 = scmp.le.s32.totalorder 1, %s15
      %p177 = scmp.lt.s32.totalorder %s15, 9
      %p178 = pnand %p176, %p177
      %p179 = pneg %p178
      // Predicated region
      $region25: #{tpu_custom_call.1} parent=5 // pred_check
        _
      $region26: #{tpu_custom_call.1} parent=5 // pred_check_branch
        %181 = sbr.rel (%p178) target = $region28
      $region27: #{tpu_custom_call.1} parent=5 // pred_region
        %s182 = ssub.s32 %s15, 1
        %s183 = sand.u32 %s51, 1
        %s184 = scalar_lea.sflag [#allocation7], %s183
        %s185 = sand.u32 %s51, 1
        %s186 = smul.addr %s185, 2
        %s187 = scalar_lea.vmem [#allocation6], %s186
        // Predicated region
        $region29: #{tpu_custom_call.1} parent=27 // pred_check
          %p188 = pneg %p64
        $region30: #{tpu_custom_call.1} parent=27 // pred_check_branch
          %190 = sbr.rel (%p188) target = $region32
        $region31: #{tpu_custom_call.1} parent=27 // pred_region
          %191 = dma.done %s184, 32
        $region32: #{tpu_custom_call.1} parent=27 // pred_fallthru
          _
        %s192 = sand.u32 %s81, 1
        %s193 = scalar_lea.sflag [#allocation10], %s192
        %s194 = sand.u32 %s81, 1
        %s195 = smul.addr %s194, 2
        %s196 = scalar_lea.vmem [#allocation9], %s195
        // Predicated region
        $region33: #{tpu_custom_call.1} parent=27 // pred_check
          %p197 = pneg %p94
        $region34: #{tpu_custom_call.1} parent=27 // pred_check_branch
          %199 = sbr.rel (%p197) target = $region36
        $region35: #{tpu_custom_call.1} parent=27 // pred_region
          %200 = dma.done %s193, 32
        $region36: #{tpu_custom_call.1} parent=27 // pred_fallthru
          _
        %s201 = sand.u32 %s51, 1
        %s202 = scalar_lea.sflag [#allocation7], %s201
        %s203 = sand.u32 %s51, 1
        %s204 = smul.addr %s203, 2
        %s205 = scalar_lea.vmem [#allocation6], %s204
        %p206 = pneg %p64
        %p207 = pneg %p61
        %s208 = sand.u32 %s81, 1
        %s209 = scalar_lea.sflag [#allocation10], %s208
        %s210 = sand.u32 %s81, 1
        %s211 = smul.addr %s210, 2
        %s212 = scalar_lea.vmem [#allocation9], %s211
        %p213 = pneg %p94
        %p214 = pneg %p91
        %p215 = pneg %p115
        %p216 = pneg %p112
        %p217 = scmp.eq.s32.totalorder %s26, 0
        %p218 = scmp.eq.s32.totalorder %s27, 0
        %p219 = pnand %p217, %p218
        %p220 = pneg %p219
        %p221 = scmp.eq.s32.totalorder %s26, 1
        %p222 = pnand %p221, %p218
        %p223 = pneg %p222
        // Predicated region
        $region37: #{tpu_custom_call.1} parent=27 // pred_check
          _
        $region38: #{tpu_custom_call.1} parent=27 // pred_check_branch
          %225 = sbr.rel (%p219) target = $region40
        $region39: #{tpu_custom_call.1} parent=27 // pred_region
          %226 = vst [vmem:[#allocation2] sm:$0x1] 0.0
          %227 = vst [vmem:[#allocation3] sm:$0x1] 0.0
          %228 = vst [vmem:[#allocation4] sm:$0x1] 0.0
          %229 = vst [vmem:[#allocation5] sm:$0x1] 0.0
        $region40: #{tpu_custom_call.1} parent=27 // pred_fallthru
          _
        %p230 = scmp.eq.s32.totalorder %s25, 0
        %p231 = pnand %p230, %p220
        %p232 = pneg %p231
        // Predicated region
        $region41: #{tpu_custom_call.1} parent=27 // pred_check
          _
        $region42: #{tpu_custom_call.1} parent=27 // pred_check_branch
          %234 = sbr.rel (%p231) target = $region44
        $region43: #{tpu_custom_call.1} parent=27 // pred_region
          %vm235 = vcmask 0
          %236 = vst.msk [vmem:[#allocation11] sm:$0x1] %vm235, 0.0
        $region44: #{tpu_custom_call.1} parent=27 // pred_fallthru
          _
        %v237 = vld [vmem:[%s187] sm:$0x3]
        %v238 = vld [vmem:[%s196] sm:$0x3]
        %v239 = vlog2.pop %v237
        %v240 = vmul.f32 %v239, 0.6931472
        %v241 = vmax.f32 %v240, -100.0
        %v242 = vsub.f32 1.0, %v237
        %v243 = vlog2.pop %v242
        %v244 = vmul.f32 %v243, 0.6931472
        %v245 = vmax.f32 %v244, -100.0
        %v246 = vmul.f32 %v238, %v241
        %v247 = vsub.f32 1.0, %v238
        %v248 = vmul.f32 %v247, %v245
        %v249 = vadd.f32 %v246, %v248
        %v250 = vsub.f32 0.0, %v249
        %v251 = vsub.f32 0.0, %v250
        %v252 = vmul.f32 %v251, 1.442695
        %v253 = vpow.pop %v252
        %v254 = vsub.f32 1.0, %v253
        %v255 = vmul.f32 %v254, %v254
        %v256 = vmul.f32 %v255, %v250
        %v257 = vld [vmem:[#allocation2] sm:$0x1]
        %vm258 = vcmask 1041408
        %v259 = vsel %vm258, %v256, 0.0
        %v260 = vrot.slane %v259, 4
        %v261 = vadd.f32 %v259, %v260
        %v262 = vrot.slane %v261, 2
        %v263 = vadd.f32 %v261, %v262
        %v264 = vrot.slane %v263, 1
        %v265 = vadd.f32 %v263, %v264
        %v266 = vadd.f32 %v257, %v265
        %267 = vst [vmem:[#allocation2] sm:$0x1] %v266
        %v268 = vld [vmem:[#allocation3] sm:$0x1]
        %v269 = vmul.f32 %v237, %v238
        %v270 = vsel %vm258, %v269, 0.0
        %v271 = vrot.slane %v270, 4
        %v272 = vadd.f32 %v270, %v271
        %v273 = vrot.slane %v272, 2
        %v274 = vadd.f32 %v272, %v273
        %v275 = vrot.slane %v274, 1
        %v276 = vadd.f32 %v274, %v275
        %v277 = vadd.f32 %v268, %v276
        %278 = vst [vmem:[#allocation3] sm:$0x1] %v277
        %v279 = vld [vmem:[#allocation4] sm:$0x1]
        %v280 = vsel %vm258, %v237, 0.0
        %v281 = vrot.slane %v280, 4
        %v282 = vadd.f32 %v280, %v281
        %v283 = vrot.slane %v282, 2
        %v284 = vadd.f32 %v282, %v283
        %v285 = vrot.slane %v284, 1
        %v286 = vadd.f32 %v284, %v285
        %v287 = vadd.f32 %v279, %v286
        %288 = vst [vmem:[#allocation4] sm:$0x1] %v287
        %v289 = vld [vmem:[#allocation5] sm:$0x1]
        %v290 = vsel %vm258, %v238, 0.0
        %v291 = vrot.slane %v290, 4
        %v292 = vadd.f32 %v290, %v291
        %v293 = vrot.slane %v292, 2
        %v294 = vadd.f32 %v292, %v293
        %v295 = vrot.slane %v294, 1
        %v296 = vadd.f32 %v294, %v295
        %v297 = vadd.f32 %v289, %v296
        %298 = vst [vmem:[#allocation5] sm:$0x1] %v297
        // Predicated region
        $region45: #{tpu_custom_call.1} parent=27 // pred_check
          _
        $region46: #{tpu_custom_call.1} parent=27 // pred_check_branch
          %300 = sbr.rel (%p222) target = $region48
        $region47: #{tpu_custom_call.1} parent=27 // pred_region
          %v301 = vld [vmem:[#allocation2] sm:$0x1]
          %vm302 = vcmask 1040384
          %v303 = vsel %vm302, %v301, 0.0
          %304 = vadd.xlane.f32.xlu0 %v303
          %v305 = vpop.xlane.xlu0 %304
          %v306 = vrot.slane %v305, 4
          %v307 = vadd.f32 %v305, %v306
          %v308 = vrot.slane %v307, 2
          %v309 = vadd.f32 %v307, %v308
          %v310 = vrot.slane %v309, 1
          %v311 = vadd.f32 %v309, %v310
          %s312 = vtos %v311
          %v313 = vld [vmem:[#allocation3] sm:$0x1]
          %v314 = vsel %vm302, %v313, 0.0
          %315 = vadd.xlane.f32.xlu0 %v314
          %v316 = vpop.xlane.xlu0 %315
          %v317 = vrot.slane %v316, 4
          %v318 = vadd.f32 %v316, %v317
          %v319 = vrot.slane %v318, 2
          %v320 = vadd.f32 %v318, %v319
          %v321 = vrot.slane %v320, 1
          %v322 = vadd.f32 %v320, %v321
          %s323 = vtos %v322
          %v324 = vld [vmem:[#allocation4] sm:$0x1]
          %v325 = vsel %vm302, %v324, 0.0
          %326 = vadd.xlane.f32.xlu0 %v325
          %v327 = vpop.xlane.xlu0 %326
          %v328 = vrot.slane %v327, 4
          %v329 = vadd.f32 %v327, %v328
          %v330 = vrot.slane %v329, 2
          %v331 = vadd.f32 %v329, %v330
          %v332 = vrot.slane %v331, 1
          %v333 = vadd.f32 %v331, %v332
          %s334 = vtos %v333
          %v335 = vld [vmem:[#allocation5] sm:$0x1]
          %v336 = vsel %vm302, %v335, 0.0
          %337 = vadd.xlane.f32.xlu0 %v336
          %v338 = vpop.xlane.xlu0 %337
          %v339 = vrot.slane %v338, 4
          %v340 = vadd.f32 %v338, %v339
          %v341 = vrot.slane %v340, 2
          %v342 = vadd.f32 %v340, %v341
          %v343 = vrot.slane %v342, 1
          %v344 = vadd.f32 %v342, %v343
          %s345 = vtos %v344
          %v346 = vrcp.pop 512.0
          %s347 = vtos %v346
          %s348 = smul.f32 %s312, %s347
          %s349 = smul.f32 %s323, 2.0
          %s350 = sadd.f32 %s349, 1e-09
          %s351 = sadd.f32 %s334, %s345
          %s352 = sadd.f32 %s351, 1e-09
          %v353 = vstv %s352
          %v354 = vrcp.pop %v353
          %s355 = vtos %v354
          %s356 = smul.f32 %s350, %s355
          %v357 = vld [vmem:[#allocation11] sm:$0x1]
          %s358 = ssub.f32 1.0, %s356
          %s359 = sadd.f32 %s348, %s358
          %v360 = vstv %s359
          %v361 = vadd.f32 %v357, %v360
          %vm362 = vcmask 0
          %363 = vst.msk [vmem:[#allocation11] sm:$0x1] %vm362, %v361
        $region48: #{tpu_custom_call.1} parent=27 // pred_fallthru
          _
        %p364 = scmp.eq.s32.totalorder %s25, 3
        %p365 = pnand %p364, %p223
        %p366 = pneg %p365
        // Predicated region
        $region49: #{tpu_custom_call.1} parent=27 // pred_check
          _
        $region50: #{tpu_custom_call.1} parent=27 // pred_check_branch
          %368 = sbr.rel (%p365) target = $region52
        $region51: #{tpu_custom_call.1} parent=27 // pred_region
          %v369 = vld [vmem:[#allocation11] sm:$0x1]
          %v370 = vrcp.pop 4.0
          %v371 = vmul.f32 %v369, %v370
          %vm372 = vcmask 0
          %373 = vst.msk [vmem:[#allocation11] sm:$0x1] %vm372, %v371
        $region52: #{tpu_custom_call.1} parent=27 // pred_fallthru
          _
        // Predicated region
        $region53: #{tpu_custom_call.1} parent=27 // pred_check
          %p374 = pneg %p112
        $region54: #{tpu_custom_call.1} parent=27 // pred_check_branch
          %376 = sbr.rel (%p374) target = $region56
        $region55: #{tpu_custom_call.1} parent=27 // pred_region
          %s378 = ssub.s32 16, 16
          %379 = vsyncadd [#allocation8], %s378
          %s381 = sshll.u32 [#allocation11], 4
          %s382 = int_to_ptr.vmem [resolvable:$true] %s381
          %384 = dma.vmem_to_hbm [thread:$0]  %s382, 16, %s2, [#allocation8]
        $region56: #{tpu_custom_call.1} parent=27 // pred_fallthru
          _
        // Predicated region
        $region57: #{tpu_custom_call.1} parent=27 // pred_check
          %p385 = pneg %p112
        $region58: #{tpu_custom_call.1} parent=27 // pred_check_branch
          %387 = sbr.rel (%p385) target = $region60
        $region59: #{tpu_custom_call.1} parent=27 // pred_region
          %388 = dma.done [#allocation8], 16
        $region60: #{tpu_custom_call.1} parent=27 // pred_fallthru
          _
      $region28: #{tpu_custom_call.1} parent=5 // pred_fallthru
        _
      %p389 = scmp.le.s32.totalorder 2, %s15
      // Predicated region
      $region61: #{tpu_custom_call.1} parent=5 // pred_check
        %p390 = pneg %p389
      $region62: #{tpu_custom_call.1} parent=5 // pred_check_branch
        %392 = sbr.rel (%p390) target = $region64
      $region63: #{tpu_custom_call.1} parent=5 // pred_region
        %s393 = ssub.s32 %s15, 2
      $region64: #{tpu_custom_call.1} parent=5 // pred_fallthru
        _
    $region6: #{tpu_custom_call.1} parent=1 // loop_footer
      %s19 = sadd.s32 1, %s15
    $region7: #{tpu_custom_call.1} parent=1 // loop_footer_branch
      %14 = sbr.rel target = $region3
    $region8: #{tpu_custom_call.1} parent=1 // loop_exit
      _
    %394 = vsyncpa [#allocation7], 1
    %s395 = scalar_lea.sflag [#allocation7], 1
    %396 = vsyncpa %s395, 1
    %397 = vsyncpa [#allocation10], 1
    %s398 = scalar_lea.sflag [#allocation10], 1
    %399 = vsyncpa %s398, 1
    %400 = vsyncpa [#allocation8], 1
    %s401 = scalar_lea.sflag [#allocation8], 1
    %402 = vsyncpa %s401, 1

</llo_original>
